<compile_context>
chip_gen: v6e
topology: v6e:2x2x1
jax: 0.10.0
libtpu: 0.0.40
codegen_flags: <defaults>
</compile_context>

<pallas_src>
import functools

import numpy as np
import jax
import jax.numpy as jnp
from jax.experimental import pallas as pl
from jax.experimental.pallas import tpu as pltpu

Q_MAX = 127.0   # int8 restrictive range [-127, 127]
Q_MIN = -127.0


def _int_quant_kernel(x_ref, o_ref, *, n_groups, group_size):
    """One (row_tile, n_groups*group_size) tile; each lane-group quantized independently.

    Per-group max/min run on static lane slices (XLU work either way); the per-element
    quant math and the store run once on the full-width tile, so VPU lane utilization
    and store density do not degrade with small D.
    """
    x = x_ref[...]                               # native dtype; max/min exact in bf16
    d = group_size
    rows = x.shape[0]

    stats = []                                   # per group: (scales, inv, lo, hi) columns
    for g in range(n_groups):                    # static unroll (n_groups is 1 or 128//D)
        xs = x[:, g * d:(g + 1) * d] if n_groups > 1 else x
        mx = jnp.max(xs, axis=-1, keepdims=True).astype(jnp.float32)
        mn = jnp.min(xs, axis=-1, keepdims=True).astype(jnp.float32)
        # NOTE: constant rows (mx == mn) give scales == 0 -> NaN/Inf for that group,
        # matching the reference PyTorch module (which does not clamp scales).
        scales = (mx - mn) / (Q_MAX - Q_MIN)     # (rows, 1)
        inv = 1.0 / scales                       # exact reciprocal, column-sized only
        zeros = Q_MIN - jnp.round(mn / scales)   # column-sized divide (PyTorch parity)
        # Fold zeros into the clip bounds: q - zeros == clip(r, Q_MIN - z, Q_MAX - z).
        # Exact (integer-valued f32) for non-degenerate rows; removes two full-tile
        # VALU passes, which matters on v7x where the kernel turns VALU-bound.
        stats.append((scales, inv, Q_MIN - zeros, Q_MAX - zeros))

    if n_groups > 1:
        def expand(idx):                         # n_groups (rows,1) cols -> (rows, width)
            return jnp.concatenate(
                [jnp.broadcast_to(s[idx], (rows, d)) for s in stats], axis=-1)
        scales_f, inv_f, lo_f, hi_f = expand(0), expand(1), expand(2), expand(3)
    else:
        scales_f, inv_f, lo_f, hi_f = stats[0]

    xf = x.astype(jnp.float32)                   # math in f32; HBM dtype preserved
    q = jnp.clip(jnp.round(xf * inv_f), lo_f, hi_f)
    o_ref[...] = (q * scales_f).astype(o_ref.dtype)   # single unmasked full-width store


def _round_up(v, m):
    return ((v + m - 1) // m) * m


def _vmem_capacity_bytes():
    try:
        return int(pltpu.get_tpu_info().vmem_capacity_bytes)
    except Exception:
        return 64 << 20        # conservative (v7x-sized); safe on every generation


def _pick_tiling(n_rows, width, itemsize):
    """Generation-aware row tile and scoped-VMEM limit."""
    cap = _vmem_capacity_bytes()
    # Bigger tiles where VMEM is plentiful (v5e/v6e: 128 MiB), smaller on v7x (64 MiB).
    per_buf_target = (8 << 20) if cap >= (96 << 20) else (4 << 20)
    sub = 8 * max(1, 4 // itemsize)              # f32 -> 8, bf16 -> 16, int8 -> 32 rows
    # Honest per-row VMEM cost: double-buffered in + out tiles (native dtype) plus
    # ~2 live full-width f32 temporaries from the in-kernel upcast / quant math.
    per_row = 4 * width * itemsize + 2 * width * 4
    vmem_budget = min(cap - (16 << 20), 48 << 20)
    rt = min(per_buf_target // max(width * itemsize, 1), vmem_budget // per_row)
    rt = max(sub, (rt // sub) * sub)
    if n_rows <= sub:
        rt = n_rows                              # full-extent row block (always legal)
    else:
        # >= ~8 grid steps when rows permit: pipeline ramp + several steps per core
        # when the row grid is sharded across v7x's two TensorCores.
        rt = min(rt, max(sub, _round_up(pl.cdiv(n_rows, 8), sub)))
        rt = min(rt, _round_up(n_rows, sub))
    vmem_limit = int(min(max(per_row * rt + (8 << 20), 16 << 20), cap - (8 << 20)))
    return int(rt), vmem_limit


def int_quantizer_forward(x):
    """Per-token asymmetric int8 fake-quant (quant-dequant) along the last axis."""
    orig_shape = x.shape
    D = int(orig_shape[-1])
    R = int(np.prod(orig_shape[:-1])) if len(orig_shape) > 1 else 1

    # Lane packing for small D: put 128//D quantization groups side-by-side on the
    # 128-lane axis (contiguous reshape, no HBM copy) so DMAs and stores stay dense.
    if D < 128 and 128 % D == 0 and R % (128 // D) == 0:
        n_groups = 128 // D
    else:
        # TODO(synk): D < 128 with 128 % D != 0 (e.g. 48, 96) stays lane-sparse
        # (masked stores, sparse DMA bursts) and runs well below the HBM roofline.
        n_groups = 1
    width = n_groups * D
    n_rows = R // n_groups

    x2 = x.reshape(n_rows, width)                # contiguous reshape: no HBM copy

    itemsize = np.dtype(x.dtype).itemsize
    row_tile, vmem_limit = _pick_tiling(n_rows, width, itemsize)

    kernel = functools.partial(_int_quant_kernel, n_groups=n_groups, group_size=D)

    out = pl.pallas_call(
        kernel,
        out_shape=jax.ShapeDtypeStruct((n_rows, width), x.dtype),
        grid_spec=pltpu.PrefetchScalarGridSpec(
            num_scalar_prefetch=0,
            grid=(pl.cdiv(n_rows, row_tile),),   # partial last tile is clipped
            # If a v7x trace ever shows exposed input DMA, add
            # pipeline_mode=pl.Buffered(3) to this single input stream.
            in_specs=[pl.BlockSpec((row_tile, width), lambda i: (i, 0))],
            out_specs=pl.BlockSpec((row_tile, width), lambda i: (i, 0)),
        ),
        compiler_params=pltpu.CompilerParams(
            dimension_semantics=("parallel",),
            vmem_limit_bytes=vmem_limit,
        ),
    )(x2)

    return out.reshape(orig_shape)


def _reference(x):
    # Unfolded ordering (round + zeros, clamp to [Q_MIN, Q_MAX], subtract zeros),
    # i.e. the PyTorch module's formulation with an exact per-row reciprocal.
    xf = x.astype(jnp.float32)
    max_val = jnp.max(xf, axis=-1, keepdims=True)
    min_val = jnp.min(xf, axis=-1, keepdims=True)
    scales = (max_val - min_val) / (Q_MAX - Q_MIN)
    zeros = Q_MIN - jnp.round(min_val / scales)
    q = jnp.clip(jnp.round(xf * (1.0 / scales)) + zeros, Q_MIN, Q_MAX)
    return ((q - zeros) * scales).astype(x.dtype)


if __name__ == "__main__":
    key = jax.random.PRNGKey(0)
    k1, k2, k3 = jax.random.split(key, 3)

    # 1) Small NCHW-like activation, D=16 -> lane-packed path (8 groups per 128 lanes).
    x1 = jax.random.normal(k1, (2, 4, 16, 16), dtype=jnp.float32)
    # 2) D multiple of 128 with a partial final row tile (general path, no padding).
    x2 = jax.random.normal(k2, (3, 7, 256), dtype=jnp.float32)
    # 3) bf16 activations stay bf16 in HBM (math in f32 in-kernel).
    x3 = jax.random.normal(k3, (2, 8, 512), dtype=jnp.bfloat16)

    for x in (x1, x2, x3):
        y = jax.block_until_ready(int_quantizer_forward(x))
        y_ref = _reference(x)
        np.testing.assert_allclose(
            np.asarray(y.astype(jnp.float32)),
            np.asarray(y_ref.astype(jnp.float32)),
            rtol=1e-5, atol=1e-5)

    print("KERNEL_OK")
</pallas_src>

<mosaic_0001>
module attributes {stable_mosaic.version = 11 : i64} {
  func.func @_int_quant_kernel(%arg0: i32, %arg1: memref<8x128xf32, #tpu.memory_space<vmem>>, %arg2: memref<8x128xf32, #tpu.memory_space<vmem>>) attributes {dimension_semantics = [#tpu.dimension_semantics<parallel>], iteration_bounds = array<i64: 2>, scalar_prefetch = 0 : i64, scratch_operands = 0 : i64, tpu.core_type = #tpu.core_type<tc>, window_params = [{transform_indices = @transform_0, window_bounds = array<i64: 8, 128>}, {transform_indices = @transform_1, window_bounds = array<i64: 8, 128>}]} {
    %c0 = arith.constant 0 : index
    %c0_0 = arith.constant 0 : index
    %0 = vector.load %arg1[%c0, %c0_0] : memref<8x128xf32, #tpu.memory_space<vmem>>, vector<8x128xf32>
    %1 = vector.extract_strided_slice %0 {offsets = [0, 0], sizes = [8, 16], strides = [1, 1]} : vector<8x128xf32> to vector<8x16xf32>
    %cst = arith.constant dense<0xFF800000> : vector<8xf32>
    %2 = vector.multi_reduction <maximumf>, %1, %cst [1] : vector<8x16xf32> to vector<8xf32>
    %3 = vector.shape_cast %2 : vector<8xf32> to vector<8x1xf32>
    %cst_1 = arith.constant dense<0x7F800000> : vector<8xf32>
    %4 = vector.multi_reduction <minimumf>, %1, %cst_1 [1] : vector<8x16xf32> to vector<8xf32>
    %5 = vector.shape_cast %4 : vector<8xf32> to vector<8x1xf32>
    %6 = arith.subf %3, %5 : vector<8x1xf32>
    %cst_2 = arith.constant 2.540000e+02 : f32
    %7 = vector.broadcast %cst_2 : f32 to vector<8x1xf32>
    %8 = arith.divf %6, %7 : vector<8x1xf32>
    %cst_3 = arith.constant 1.000000e+00 : f32
    %9 = vector.broadcast %cst_3 : f32 to vector<8x1xf32>
    %10 = arith.divf %9, %8 : vector<8x1xf32>
    %11 = arith.divf %5, %8 : vector<8x1xf32>
    %12 = math.roundeven %11 : vector<8x1xf32>
    %cst_4 = arith.constant -1.270000e+02 : f32
    %13 = vector.broadcast %cst_4 : f32 to vector<8x1xf32>
    %14 = arith.subf %13, %12 : vector<8x1xf32>
    %cst_5 = arith.constant -1.270000e+02 : f32
    %15 = vector.broadcast %cst_5 : f32 to vector<8x1xf32>
    %16 = arith.subf %15, %14 : vector<8x1xf32>
    %cst_6 = arith.constant 1.270000e+02 : f32
    %17 = vector.broadcast %cst_6 : f32 to vector<8x1xf32>
    %18 = arith.subf %17, %14 : vector<8x1xf32>
    %19 = vector.extract_strided_slice %0 {offsets = [0, 16], sizes = [8, 16], strides = [1, 1]} : vector<8x128xf32> to vector<8x16xf32>
    %cst_7 = arith.constant dense<0xFF800000> : vector<8xf32>
    %20 = vector.multi_reduction <maximumf>, %19, %cst_7 [1] : vector<8x16xf32> to vector<8xf32>
    %21 = vector.shape_cast %20 : vector<8xf32> to vector<8x1xf32>
    %cst_8 = arith.constant dense<0x7F800000> : vector<8xf32>
    %22 = vector.multi_reduction <minimumf>, %19, %cst_8 [1] : vector<8x16xf32> to vector<8xf32>
    %23 = vector.shape_cast %22 : vector<8xf32> to vector<8x1xf32>
    %24 = arith.subf %21, %23 : vector<8x1xf32>
    %cst_9 = arith.constant 2.540000e+02 : f32
    %25 = vector.broadcast %cst_9 : f32 to vector<8x1xf32>
    %26 = arith.divf %24, %25 : vector<8x1xf32>
    %cst_10 = arith.constant 1.000000e+00 : f32
    %27 = vector.broadcast %cst_10 : f32 to vector<8x1xf32>
    %28 = arith.divf %27, %26 : vector<8x1xf32>
    %29 = arith.divf %23, %26 : vector<8x1xf32>
    %30 = math.roundeven %29 : vector<8x1xf32>
    %cst_11 = arith.constant -1.270000e+02 : f32
    %31 = vector.broadcast %cst_11 : f32 to vector<8x1xf32>
    %32 = arith.subf %31, %30 : vector<8x1xf32>
    %cst_12 = arith.constant -1.270000e+02 : f32
    %33 = vector.broadcast %cst_12 : f32 to vector<8x1xf32>
    %34 = arith.subf %33, %32 : vector<8x1xf32>
    %cst_13 = arith.constant 1.270000e+02 : f32
    %35 = vector.broadcast %cst_13 : f32 to vector<8x1xf32>
    %36 = arith.subf %35, %32 : vector<8x1xf32>
    %37 = vector.extract_strided_slice %0 {offsets = [0, 32], sizes = [8, 16], strides = [1, 1]} : vector<8x128xf32> to vector<8x16xf32>
    %cst_14 = arith.constant dense<0xFF800000> : vector<8xf32>
    %38 = vector.multi_reduction <maximumf>, %37, %cst_14 [1] : vector<8x16xf32> to vector<8xf32>
    %39 = vector.shape_cast %38 : vector<8xf32> to vector<8x1xf32>
    %cst_15 = arith.constant dense<0x7F800000> : vector<8xf32>
    %40 = vector.multi_reduction <minimumf>, %37, %cst_15 [1] : vector<8x16xf32> to vector<8xf32>
    %41 = vector.shape_cast %40 : vector<8xf32> to vector<8x1xf32>
    %42 = arith.subf %39, %41 : vector<8x1xf32>
    %cst_16 = arith.constant 2.540000e+02 : f32
    %43 = vector.broadcast %cst_16 : f32 to vector<8x1xf32>
    %44 = arith.divf %42, %43 : vector<8x1xf32>
    %cst_17 = arith.constant 1.000000e+00 : f32
    %45 = vector.broadcast %cst_17 : f32 to vector<8x1xf32>
    %46 = arith.divf %45, %44 : vector<8x1xf32>
    %47 = arith.divf %41, %44 : vector<8x1xf32>
    %48 = math.roundeven %47 : vector<8x1xf32>
    %cst_18 = arith.constant -1.270000e+02 : f32
    %49 = vector.broadcast %cst_18 : f32 to vector<8x1xf32>
    %50 = arith.subf %49, %48 : vector<8x1xf32>
    %cst_19 = arith.constant -1.270000e+02 : f32
    %51 = vector.broadcast %cst_19 : f32 to vector<8x1xf32>
    %52 = arith.subf %51, %50 : vector<8x1xf32>
    %cst_20 = arith.constant 1.270000e+02 : f32
    %53 = vector.broadcast %cst_20 : f32 to vector<8x1xf32>
    %54 = arith.subf %53, %50 : vector<8x1xf32>
    %55 = vector.extract_strided_slice %0 {offsets = [0, 48], sizes = [8, 16], strides = [1, 1]} : vector<8x128xf32> to vector<8x16xf32>
    %cst_21 = arith.constant dense<0xFF800000> : vector<8xf32>
    %56 = vector.multi_reduction <maximumf>, %55, %cst_21 [1] : vector<8x16xf32> to vector<8xf32>
    %57 = vector.shape_cast %56 : vector<8xf32> to vector<8x1xf32>
    %cst_22 = arith.constant dense<0x7F800000> : vector<8xf32>
    %58 = vector.multi_reduction <minimumf>, %55, %cst_22 [1] : vector<8x16xf32> to vector<8xf32>
    %59 = vector.shape_cast %58 : vector<8xf32> to vector<8x1xf32>
    %60 = arith.subf %57, %59 : vector<8x1xf32>
    %cst_23 = arith.constant 2.540000e+02 : f32
    %61 = vector.broadcast %cst_23 : f32 to vector<8x1xf32>
    %62 = arith.divf %60, %61 : vector<8x1xf32>
    %cst_24 = arith.constant 1.000000e+00 : f32
    %63 = vector.broadcast %cst_24 : f32 to vector<8x1xf32>
    %64 = arith.divf %63, %62 : vector<8x1xf32>
    %65 = arith.divf %59, %62 : vector<8x1xf32>
    %66 = math.roundeven %65 : vector<8x1xf32>
    %cst_25 = arith.constant -1.270000e+02 : f32
    %67 = vector.broadcast %cst_25 : f32 to vector<8x1xf32>
    %68 = arith.subf %67, %66 : vector<8x1xf32>
    %cst_26 = arith.constant -1.270000e+02 : f32
    %69 = vector.broadcast %cst_26 : f32 to vector<8x1xf32>
    %70 = arith.subf %69, %68 : vector<8x1xf32>
    %cst_27 = arith.constant 1.270000e+02 : f32
    %71 = vector.broadcast %cst_27 : f32 to vector<8x1xf32>
    %72 = arith.subf %71, %68 : vector<8x1xf32>
    %73 = vector.extract_strided_slice %0 {offsets = [0, 64], sizes = [8, 16], strides = [1, 1]} : vector<8x128xf32> to vector<8x16xf32>
    %cst_28 = arith.constant dense<0xFF800000> : vector<8xf32>
    %74 = vector.multi_reduction <maximumf>, %73, %cst_28 [1] : vector<8x16xf32> to vector<8xf32>
    %75 = vector.shape_cast %74 : vector<8xf32> to vector<8x1xf32>
    %cst_29 = arith.constant dense<0x7F800000> : vector<8xf32>
    %76 = vector.multi_reduction <minimumf>, %73, %cst_29 [1] : vector<8x16xf32> to vector<8xf32>
    %77 = vector.shape_cast %76 : vector<8xf32> to vector<8x1xf32>
    %78 = arith.subf %75, %77 : vector<8x1xf32>
    %cst_30 = arith.constant 2.540000e+02 : f32
    %79 = vector.broadcast %cst_30 : f32 to vector<8x1xf32>
    %80 = arith.divf %78, %79 : vector<8x1xf32>
    %cst_31 = arith.constant 1.000000e+00 : f32
    %81 = vector.broadcast %cst_31 : f32 to vector<8x1xf32>
    %82 = arith.divf %81, %80 : vector<8x1xf32>
    %83 = arith.divf %77, %80 : vector<8x1xf32>
    %84 = math.roundeven %83 : vector<8x1xf32>
    %cst_32 = arith.constant -1.270000e+02 : f32
    %85 = vector.broadcast %cst_32 : f32 to vector<8x1xf32>
    %86 = arith.subf %85, %84 : vector<8x1xf32>
    %cst_33 = arith.constant -1.270000e+02 : f32
    %87 = vector.broadcast %cst_33 : f32 to vector<8x1xf32>
    %88 = arith.subf %87, %86 : vector<8x1xf32>
    %cst_34 = arith.constant 1.270000e+02 : f32
    %89 = vector.broadcast %cst_34 : f32 to vector<8x1xf32>
    %90 = arith.subf %89, %86 : vector<8x1xf32>
    %91 = vector.extract_strided_slice %0 {offsets = [0, 80], sizes = [8, 16], strides = [1, 1]} : vector<8x128xf32> to vector<8x16xf32>
    %cst_35 = arith.constant dense<0xFF800000> : vector<8xf32>
    %92 = vector.multi_reduction <maximumf>, %91, %cst_35 [1] : vector<8x16xf32> to vector<8xf32>
    %93 = vector.shape_cast %92 : vector<8xf32> to vector<8x1xf32>
    %cst_36 = arith.constant dense<0x7F800000> : vector<8xf32>
    %94 = vector.multi_reduction <minimumf>, %91, %cst_36 [1] : vector<8x16xf32> to vector<8xf32>
    %95 = vector.shape_cast %94 : vector<8xf32> to vector<8x1xf32>
    %96 = arith.subf %93, %95 : vector<8x1xf32>
    %cst_37 = arith.constant 2.540000e+02 : f32
    %97 = vector.broadcast %cst_37 : f32 to vector<8x1xf32>
    %98 = arith.divf %96, %97 : vector<8x1xf32>
    %cst_38 = arith.constant 1.000000e+00 : f32
    %99 = vector.broadcast %cst_38 : f32 to vector<8x1xf32>
    %100 = arith.divf %99, %98 : vector<8x1xf32>
    %101 = arith.divf %95, %98 : vector<8x1xf32>
    %102 = math.roundeven %101 : vector<8x1xf32>
    %cst_39 = arith.constant -1.270000e+02 : f32
    %103 = vector.broadcast %cst_39 : f32 to vector<8x1xf32>
    %104 = arith.subf %103, %102 : vector<8x1xf32>
    %cst_40 = arith.constant -1.270000e+02 : f32
    %105 = vector.broadcast %cst_40 : f32 to vector<8x1xf32>
    %106 = arith.subf %105, %104 : vector<8x1xf32>
    %cst_41 = arith.constant 1.270000e+02 : f32
    %107 = vector.broadcast %cst_41 : f32 to vector<8x1xf32>
    %108 = arith.subf %107, %104 : vector<8x1xf32>
    %109 = vector.extract_strided_slice %0 {offsets = [0, 96], sizes = [8, 16], strides = [1, 1]} : vector<8x128xf32> to vector<8x16xf32>
    %cst_42 = arith.constant dense<0xFF800000> : vector<8xf32>
    %110 = vector.multi_reduction <maximumf>, %109, %cst_42 [1] : vector<8x16xf32> to vector<8xf32>
    %111 = vector.shape_cast %110 : vector<8xf32> to vector<8x1xf32>
    %cst_43 = arith.constant dense<0x7F800000> : vector<8xf32>
    %112 = vector.multi_reduction <minimumf>, %109, %cst_43 [1] : vector<8x16xf32> to vector<8xf32>
    %113 = vector.shape_cast %112 : vector<8xf32> to vector<8x1xf32>
    %114 = arith.subf %111, %113 : vector<8x1xf32>
    %cst_44 = arith.constant 2.540000e+02 : f32
    %115 = vector.broadcast %cst_44 : f32 to vector<8x1xf32>
    %116 = arith.divf %114, %115 : vector<8x1xf32>
    %cst_45 = arith.constant 1.000000e+00 : f32
    %117 = vector.broadcast %cst_45 : f32 to vector<8x1xf32>
    %118 = arith.divf %117, %116 : vector<8x1xf32>
    %119 = arith.divf %113, %116 : vector<8x1xf32>
    %120 = math.roundeven %119 : vector<8x1xf32>
    %cst_46 = arith.constant -1.270000e+02 : f32
    %121 = vector.broadcast %cst_46 : f32 to vector<8x1xf32>
    %122 = arith.subf %121, %120 : vector<8x1xf32>
    %cst_47 = arith.constant -1.270000e+02 : f32
    %123 = vector.broadcast %cst_47 : f32 to vector<8x1xf32>
    %124 = arith.subf %123, %122 : vector<8x1xf32>
    %cst_48 = arith.constant 1.270000e+02 : f32
    %125 = vector.broadcast %cst_48 : f32 to vector<8x1xf32>
    %126 = arith.subf %125, %122 : vector<8x1xf32>
    %127 = vector.extract_strided_slice %0 {offsets = [0, 112], sizes = [8, 16], strides = [1, 1]} : vector<8x128xf32> to vector<8x16xf32>
    %cst_49 = arith.constant dense<0xFF800000> : vector<8xf32>
    %128 = vector.multi_reduction <maximumf>, %127, %cst_49 [1] : vector<8x16xf32> to vector<8xf32>
    %129 = vector.shape_cast %128 : vector<8xf32> to vector<8x1xf32>
    %cst_50 = arith.constant dense<0x7F800000> : vector<8xf32>
    %130 = vector.multi_reduction <minimumf>, %127, %cst_50 [1] : vector<8x16xf32> to vector<8xf32>
    %131 = vector.shape_cast %130 : vector<8xf32> to vector<8x1xf32>
    %132 = arith.subf %129, %131 : vector<8x1xf32>
    %cst_51 = arith.constant 2.540000e+02 : f32
    %133 = vector.broadcast %cst_51 : f32 to vector<8x1xf32>
    %134 = arith.divf %132, %133 : vector<8x1xf32>
    %cst_52 = arith.constant 1.000000e+00 : f32
    %135 = vector.broadcast %cst_52 : f32 to vector<8x1xf32>
    %136 = arith.divf %135, %134 : vector<8x1xf32>
    %137 = arith.divf %131, %134 : vector<8x1xf32>
    %138 = math.roundeven %137 : vector<8x1xf32>
    %cst_53 = arith.constant -1.270000e+02 : f32
    %139 = vector.broadcast %cst_53 : f32 to vector<8x1xf32>
    %140 = arith.subf %139, %138 : vector<8x1xf32>
    %cst_54 = arith.constant -1.270000e+02 : f32
    %141 = vector.broadcast %cst_54 : f32 to vector<8x1xf32>
    %142 = arith.subf %141, %140 : vector<8x1xf32>
    %cst_55 = arith.constant 1.270000e+02 : f32
    %143 = vector.broadcast %cst_55 : f32 to vector<8x1xf32>
    %144 = arith.subf %143, %140 : vector<8x1xf32>
    %145 = vector.shape_cast %8 : vector<8x1xf32> to vector<8x1xf32>
    %146 = vector.broadcast %145 : vector<8x1xf32> to vector<8x16xf32>
    %147 = vector.shape_cast %26 : vector<8x1xf32> to vector<8x1xf32>
    %148 = vector.broadcast %147 : vector<8x1xf32> to vector<8x16xf32>
    %149 = vector.shape_cast %44 : vector<8x1xf32> to vector<8x1xf32>
    %150 = vector.broadcast %149 : vector<8x1xf32> to vector<8x16xf32>
    %151 = vector.shape_cast %62 : vector<8x1xf32> to vector<8x1xf32>
    %152 = vector.broadcast %151 : vector<8x1xf32> to vector<8x16xf32>
    %153 = vector.shape_cast %80 : vector<8x1xf32> to vector<8x1xf32>
    %154 = vector.broadcast %153 : vector<8x1xf32> to vector<8x16xf32>
    %155 = vector.shape_cast %98 : vector<8x1xf32> to vector<8x1xf32>
    %156 = vector.broadcast %155 : vector<8x1xf32> to vector<8x16xf32>
    %157 = vector.shape_cast %116 : vector<8x1xf32> to vector<8x1xf32>
    %158 = vector.broadcast %157 : vector<8x1xf32> to vector<8x16xf32>
    %159 = vector.shape_cast %134 : vector<8x1xf32> to vector<8x1xf32>
    %160 = vector.broadcast %159 : vector<8x1xf32> to vector<8x16xf32>
    %161 = tpu.concatenate %146, %148, %150, %152, %154, %156, %158, %160 in 1 : vector<8x16xf32>, vector<8x16xf32>, vector<8x16xf32>, vector<8x16xf32>, vector<8x16xf32>, vector<8x16xf32>, vector<8x16xf32>, vector<8x16xf32> -> vector<8x128xf32>
    %162 = vector.shape_cast %10 : vector<8x1xf32> to vector<8x1xf32>
    %163 = vector.broadcast %162 : vector<8x1xf32> to vector<8x16xf32>
    %164 = vector.shape_cast %28 : vector<8x1xf32> to vector<8x1xf32>
    %165 = vector.broadcast %164 : vector<8x1xf32> to vector<8x16xf32>
    %166 = vector.shape_cast %46 : vector<8x1xf32> to vector<8x1xf32>
    %167 = vector.broadcast %166 : vector<8x1xf32> to vector<8x16xf32>
    %168 = vector.shape_cast %64 : vector<8x1xf32> to vector<8x1xf32>
    %169 = vector.broadcast %168 : vector<8x1xf32> to vector<8x16xf32>
    %170 = vector.shape_cast %82 : vector<8x1xf32> to vector<8x1xf32>
    %171 = vector.broadcast %170 : vector<8x1xf32> to vector<8x16xf32>
    %172 = vector.shape_cast %100 : vector<8x1xf32> to vector<8x1xf32>
    %173 = vector.broadcast %172 : vector<8x1xf32> to vector<8x16xf32>
    %174 = vector.shape_cast %118 : vector<8x1xf32> to vector<8x1xf32>
    %175 = vector.broadcast %174 : vector<8x1xf32> to vector<8x16xf32>
    %176 = vector.shape_cast %136 : vector<8x1xf32> to vector<8x1xf32>
    %177 = vector.broadcast %176 : vector<8x1xf32> to vector<8x16xf32>
    %178 = tpu.concatenate %163, %165, %167, %169, %171, %173, %175, %177 in 1 : vector<8x16xf32>, vector<8x16xf32>, vector<8x16xf32>, vector<8x16xf32>, vector<8x16xf32>, vector<8x16xf32>, vector<8x16xf32>, vector<8x16xf32> -> vector<8x128xf32>
    %179 = vector.shape_cast %16 : vector<8x1xf32> to vector<8x1xf32>
    %180 = vector.broadcast %179 : vector<8x1xf32> to vector<8x16xf32>
    %181 = vector.shape_cast %34 : vector<8x1xf32> to vector<8x1xf32>
    %182 = vector.broadcast %181 : vector<8x1xf32> to vector<8x16xf32>
    %183 = vector.shape_cast %52 : vector<8x1xf32> to vector<8x1xf32>
    %184 = vector.broadcast %183 : vector<8x1xf32> to vector<8x16xf32>
    %185 = vector.shape_cast %70 : vector<8x1xf32> to vector<8x1xf32>
    %186 = vector.broadcast %185 : vector<8x1xf32> to vector<8x16xf32>
    %187 = vector.shape_cast %88 : vector<8x1xf32> to vector<8x1xf32>
    %188 = vector.broadcast %187 : vector<8x1xf32> to vector<8x16xf32>
    %189 = vector.shape_cast %106 : vector<8x1xf32> to vector<8x1xf32>
    %190 = vector.broadcast %189 : vector<8x1xf32> to vector<8x16xf32>
    %191 = vector.shape_cast %124 : vector<8x1xf32> to vector<8x1xf32>
    %192 = vector.broadcast %191 : vector<8x1xf32> to vector<8x16xf32>
    %193 = vector.shape_cast %142 : vector<8x1xf32> to vector<8x1xf32>
    %194 = vector.broadcast %193 : vector<8x1xf32> to vector<8x16xf32>
    %195 = tpu.concatenate %180, %182, %184, %186, %188, %190, %192, %194 in 1 : vector<8x16xf32>, vector<8x16xf32>, vector<8x16xf32>, vector<8x16xf32>, vector<8x16xf32>, vector<8x16xf32>, vector<8x16xf32>, vector<8x16xf32> -> vector<8x128xf32>
    %196 = vector.shape_cast %18 : vector<8x1xf32> to vector<8x1xf32>
    %197 = vector.broadcast %196 : vector<8x1xf32> to vector<8x16xf32>
    %198 = vector.shape_cast %36 : vector<8x1xf32> to vector<8x1xf32>
    %199 = vector.broadcast %198 : vector<8x1xf32> to vector<8x16xf32>
    %200 = vector.shape_cast %54 : vector<8x1xf32> to vector<8x1xf32>
    %201 = vector.broadcast %200 : vector<8x1xf32> to vector<8x16xf32>
    %202 = vector.shape_cast %72 : vector<8x1xf32> to vector<8x1xf32>
    %203 = vector.broadcast %202 : vector<8x1xf32> to vector<8x16xf32>
    %204 = vector.shape_cast %90 : vector<8x1xf32> to vector<8x1xf32>
    %205 = vector.broadcast %204 : vector<8x1xf32> to vector<8x16xf32>
    %206 = vector.shape_cast %108 : vector<8x1xf32> to vector<8x1xf32>
    %207 = vector.broadcast %206 : vector<8x1xf32> to vector<8x16xf32>
    %208 = vector.shape_cast %126 : vector<8x1xf32> to vector<8x1xf32>
    %209 = vector.broadcast %208 : vector<8x1xf32> to vector<8x16xf32>
    %210 = vector.shape_cast %144 : vector<8x1xf32> to vector<8x1xf32>
    %211 = vector.broadcast %210 : vector<8x1xf32> to vector<8x16xf32>
    %212 = tpu.concatenate %197, %199, %201, %203, %205, %207, %209, %211 in 1 : vector<8x16xf32>, vector<8x16xf32>, vector<8x16xf32>, vector<8x16xf32>, vector<8x16xf32>, vector<8x16xf32>, vector<8x16xf32>, vector<8x16xf32> -> vector<8x128xf32>
    %213 = arith.mulf %0, %178 : vector<8x128xf32>
    %214 = math.roundeven %213 : vector<8x128xf32>
    %215 = arith.maximumf %195, %214 : vector<8x128xf32>
    %216 = arith.minimumf %212, %215 : vector<8x128xf32>
    %217 = arith.mulf %216, %161 : vector<8x128xf32>
    %c0_56 = arith.constant 0 : index
    %c0_57 = arith.constant 0 : index
    %218 = vector.load %arg2[%c0_56, %c0_57] : memref<8x128xf32, #tpu.memory_space<vmem>>, vector<8x128xf32>
    tpu.vector_store %arg2[%c0_56, %c0_57], %217 {strides = array<i32>} : memref<8x128xf32, #tpu.memory_space<vmem>>, vector<8x128xf32>,
    return
  }
  func.func @transform_0(%arg0: i32) -> (i32, i32) {
    %c0_i32 = arith.constant 0 : i32
    %c0_i32_0 = arith.constant 0 : i32
    return %arg0, %c0_i32 : i32, i32
  }
  func.func @transform_1(%arg0: i32) -> (i32, i32) {
    %c0_i32 = arith.constant 0 : i32
    %c0_i32_0 = arith.constant 0 : i32
    return %arg0, %c0_i32 : i32, i32
  }
}

</mosaic_0001>

<llo_original>
// kernel: tpu_custom_call.1
$region0: #{tpu_custom_call.1}
  #allocation0 [shape = 'u32[]', space=smem, size = 0x4, offset = 0x4, fixed_abs, tag = 'smem constant byte address 0x4 - core index']
  #allocation1 [shape = 'u32[144,128]{1,0:T(1,128)}', space=vmem, size = 0x12000, scoped, tag = 'internal scratch']
  %s0 = inlined_call_operand.hbm [shape: f32[16,128], index: 0, kind: input, shape index: {}]
  %s1 = inlined_call_operand.hbm [shape: f32[16,128], index: 1, kind: output, shape index: {}]
  %s2 = sld [smem:[#allocation0]]
  $region41: #{tpu_custom_call.1} parent=0
    _
  %s4 = ssub.s32 1, %s2
  %s5 = scalar_select 0, %s4, %s2
  $region1: #{tpu_custom_call.1} parent=0
    #allocation2 [shape = 'u8[8192]{0}', space=vmem, size = 0x2000, scoped, tag = 'input window, operand 0']
    #allocation3 [shape = 's32[2]{0}', space=sflag, size = 0x8, scoped, tag = 'scoped memory for tpu_custom_call.1']
    #allocation4 [shape = 's32[2]{0}', space=sflag, size = 0x8, scoped, tag = 'scoped memory for tpu_custom_call.1']
    #allocation5 [shape = 'u8[8192]{0}', space=vmem, size = 0x2000, scoped, tag = 'output window, operand 0']
    %6 = vsyncpa [#allocation3], 0
    %s7 = scalar_lea.sflag [#allocation3], 1
    %8 = vsyncpa %s7, 0
    %9 = vsyncpa [#allocation4], 0
    %s10 = scalar_lea.sflag [#allocation4], 1
    %11 = vsyncpa %s10, 0
    loop: start=0, step=1, limit=4
    $region2: #{tpu_custom_call.1} parent=1 // loop_pre_header
      _
    $region3: #{tpu_custom_call.1} parent=1 // loop_header
      %s13 = sphi 0, %s17
      %p14 = scmp.ge.s32.totalorder %s13, 4
      %s23 = sphi 0, %s25
      %s26 = sphi 0, %s23
      %s27 = sphi 0, %s26
      %s43 = sphi 0, %s27
      %s49 = sphi 0, %s51
      %s52 = sphi 0, %s49
      %s53 = sphi 0, %s52
      %s69 = sphi 0, %s53
    $region4: #{tpu_custom_call.1} parent=1 // loop_header_branch
      %16 = sbr.rel (%p14) target = $region8
    $region5: #{tpu_custom_call.1} parent=1 // loop_body
      %s18 = ssub.s32 %s13, 1
      %s19 = ssub.s32 %s13, 2
      %s20 = sadd.s32 %s13, 1
      %s21 = ssub.s32 %s13, %s20
      %p22 = scmp.eq.s32.totalorder %s21, 0
      %s24 = sadd.s32 %s23, 1
      %s25 = scalar_select %p22, %s23, %s24
      %p28 = pneg %p22
      %p29 = scmp.eq.s32.totalorder %s13, 1
      %p30 = por %p28, %p29
      %p31 = scmp.ne.s32.totalorder %s23, %s26
      %p32 = scmp.eq.s32.totalorder %s13, 0
      %p33 = por %p31, %p32
      %p34 = scmp.ne.s32.totalorder %s23, %s26
      %p35 = scmp.eq.s32.totalorder %s18, 1
      %p36 = por %p34, %p35
      %p37 = scmp.ne.s32.totalorder %s26, %s27
      %p38 = scmp.eq.s32.totalorder %s18, 0
      %p39 = por %p37, %p38
      %p40 = scmp.ne.s32.totalorder %s26, %s27
      %p41 = scmp.eq.s32.totalorder %s19, 1
      %p42 = por %p40, %p41
      %p44 = scmp.ne.s32.totalorder %s27, %s43
      %p45 = scmp.eq.s32.totalorder %s19, 0
      %p46 = por %p44, %p45
      %s47 = ssub.s32 %s13, %s20
      %p48 = scmp.eq.s32.totalorder %s47, 0
      %s50 = sadd.s32 %s49, 1
      %s51 = scalar_select %p48, %s49, %s50
      %p54 = pneg %p48
      %p55 = scmp.eq.s32.totalorder %s13, 1
      %p56 = por %p54, %p55
      %p57 = scmp.ne.s32.totalorder %s49, %s52
      %p58 = scmp.eq.s32.totalorder %s13, 0
      %p59 = por %p57, %p58
      %p60 = scmp.ne.s32.totalorder %s49, %s52
      %p61 = scmp.eq.s32.totalorder %s18, 1
      %p62 = por %p60, %p61
      %p63 = scmp.ne.s32.totalorder %s52, %s53
      %p64 = scmp.eq.s32.totalorder %s18, 0
      %p65 = por %p63, %p64
      %p66 = scmp.ne.s32.totalorder %s52, %s53
      %p67 = scmp.eq.s32.totalorder %s19, 1
      %p68 = por %p66, %p67
      %p70 = scmp.ne.s32.totalorder %s53, %s69
      %p71 = scmp.eq.s32.totalorder %s19, 0
      %p72 = por %p70, %p71
      %p73 = scmp.le.s32.totalorder 1, %s13
      %p74 = scmp.lt.s32.totalorder %s13, 3
      %p75 = pnand %p73, %p74
      %p76 = pneg %p75
      // Predicated region
      $region9: #{tpu_custom_call.1} parent=5 // pred_check
        _
      $region10: #{tpu_custom_call.1} parent=5 // pred_check_branch
        %78 = sbr.rel (%p75) target = $region12
      $region11: #{tpu_custom_call.1} parent=5 // pred_region
        %s79 = ssub.s32 %s13, 1
      $region12: #{tpu_custom_call.1} parent=5 // pred_fallthru
        _
      %p80 = scmp.lt.s32.totalorder %s13, 2
      // Predicated region
      $region13: #{tpu_custom_call.1} parent=5 // pred_check
        %p81 = pneg %p80
      $region14: #{tpu_custom_call.1} parent=5 // pred_check_branch
        %83 = sbr.rel (%p81) target = $region16
      $region15: #{tpu_custom_call.1} parent=5 // pred_region
        // Predicated region
        $region17: #{tpu_custom_call.1} parent=15 // pred_check
          %p84 = pneg %p33
        $region18: #{tpu_custom_call.1} parent=15 // pred_check_branch
          %86 = sbr.rel (%p84) target = $region20
        $region19: #{tpu_custom_call.1} parent=15 // pred_region
          %s87 = sand.u32 %s23, 1
          %s88 = scalar_lea.sflag [#allocation3], %s87
          %s89 = sand.u32 %s23, 1
          %s90 = smul.addr %s89, 8
          %s91 = scalar_lea.vmem [#allocation2], %s90
          %s93 = ssub.s32 128, 128
          %94 = vsyncadd %s88, %s93
          %s95 = smul.addr %s13, 128
          %s96 = scalar_lea.hbm %s0, %s95
          %s98 = sshll.u32 %s91, 4
          %s99 = int_to_ptr.vmem [resolvable:$true] %s98
          %101 = dma.hbm_to_vmem [thread:$0]  %s96, 128, %s99, %s88
        $region20: #{tpu_custom_call.1} parent=15 // pred_fallthru
          _
      $region16: #{tpu_custom_call.1} parent=5 // pred_fallthru
        _
      %p102 = scmp.le.s32.totalorder 1, %s13
      %p103 = scmp.lt.s32.totalorder %s13, 3
      %p104 = pnand %p102, %p103
      %p105 = pneg %p104
      // Predicated region
      $region21: #{tpu_custom_call.1} parent=5 // pred_check
        _
      $region22: #{tpu_custom_call.1} parent=5 // pred_check_branch
        %107 = sbr.rel (%p104) target = $region24
      $region23: #{tpu_custom_call.1} parent=5 // pred_region
        %s108 = ssub.s32 %s13, 1
        %s109 = sand.u32 %s26, 1
        %s110 = scalar_lea.sflag [#allocation3], %s109
        %s111 = sand.u32 %s26, 1
        %s112 = smul.addr %s111, 8
        %s113 = scalar_lea.vmem [#allocation2], %s112
        // Predicated region
        $region25: #{tpu_custom_call.1} parent=23 // pred_check
          %p114 = pneg %p39
        $region26: #{tpu_custom_call.1} parent=23 // pred_check_branch
          %116 = sbr.rel (%p114) target = $region28
        $region27: #{tpu_custom_call.1} parent=23 // pred_region
          %117 = dma.done %s110, 128
        $region28: #{tpu_custom_call.1} parent=23 // pred_fallthru
          _
        %s118 = sand.u32 %s26, 1
        %s119 = scalar_lea.sflag [#allocation3], %s118
        %s120 = sand.u32 %s26, 1
        %s121 = smul.addr %s120, 8
        %s122 = scalar_lea.vmem [#allocation2], %s121
        %p123 = pneg %p39
        %p124 = pneg %p36
        %p125 = pneg %p65
        %p126 = pneg %p62
        %s127 = sand.u32 %s52, 1
        %s128 = scalar_lea.sflag [#allocation4], %s127
        %s129 = sand.u32 %s52, 1
        %s130 = smul.addr %s129, 8
        %s131 = scalar_lea.vmem [#allocation5], %s130
        %v132 = vld [vmem:[%s113] sm:$0xff]
        %vm133 = vcmask 130048
        %v134 = vsel %vm133, %v132, -inf
        %135 = vmax.xlane.f32.xlu0 %v134
        %v136 = vpop.xlane.xlu0 %135
        %v137 = vsel %vm133, %v132, inf
        %138 = vmin.xlane.f32.xlu0 %v137
        %v139 = vpop.xlane.xlu0 %138
        %v140 = vsub.f32 %v136, %v139
        %v141 = vrcp.pop 254.0
        %v142 = vmul.f32 %v140, %v141
        %v143 = vrcp.pop %v142
        %v144 = vmul.f32 1.0, %v143
        %v145 = vmul.f32 %v139, %v143
        %v146 = vround.ne.pseudo %v145
        %v147 = vsub.f32 -127.0, %v146
        %v148 = vsub.f32 -127.0, %v147
        %v149 = vsub.f32 127.0, %v147
        %vm150 = vcmask 261248
        %v151 = vsel %vm150, %v132, -inf
        %152 = vmax.xlane.f32.xlu0 %v151
        %v153 = vpop.xlane.xlu0 %152
        %v154 = vsel %vm150, %v132, inf
        %155 = vmin.xlane.f32.xlu0 %v154
        %v156 = vpop.xlane.xlu0 %155
        %v157 = vsub.f32 %v153, %v156
        %v158 = vmul.f32 %v157, %v141
        %v159 = vrcp.pop %v158
        %v160 = vmul.f32 1.0, %v159
        %v161 = vmul.f32 %v156, %v159
        %v162 = vround.ne.pseudo %v161
        %v163 = vsub.f32 -127.0, %v162
        %v164 = vsub.f32 -127.0, %v163
        %v165 = vsub.f32 127.0, %v163
        %vm166 = vcmask 392448
        %v167 = vsel %vm166, %v132, -inf
        %168 = vmax.xlane.f32.xlu0 %v167
        %v169 = vpop.xlane.xlu0 %168
        %v170 = vsel %vm166, %v132, inf
        %171 = vmin.xlane.f32.xlu0 %v170
        %v172 = vpop.xlane.xlu0 %171
        %v173 = vsub.f32 %v169, %v172
        %v174 = vmul.f32 %v173, %v141
        %v175 = vrcp.pop %v174
        %v176 = vmul.f32 1.0, %v175
        %v177 = vmul.f32 %v172, %v175
        %v178 = vround.ne.pseudo %v177
        %v179 = vsub.f32 -127.0, %v178
        %v180 = vsub.f32 -127.0, %v179
        %v181 = vsub.f32 127.0, %v179
        %vm182 = vcmask 523648
        %v183 = vsel %vm182, %v132, -inf
        %184 = vmax.xlane.f32.xlu0 %v183
        %v185 = vpop.xlane.xlu0 %184
        %v186 = vsel %vm182, %v132, inf
        %187 = vmin.xlane.f32.xlu0 %v186
        %v188 = vpop.xlane.xlu0 %187
        %v189 = vsub.f32 %v185, %v188
        %v190 = vmul.f32 %v189, %v141
        %v191 = vrcp.pop %v190
        %v192 = vmul.f32 1.0, %v191
        %v193 = vmul.f32 %v188, %v191
        %v194 = vround.ne.pseudo %v193
        %v195 = vsub.f32 -127.0, %v194
        %v196 = vsub.f32 -127.0, %v195
        %v197 = vsub.f32 127.0, %v195
        %vm198 = vcmask 654848
        %v199 = vsel %vm198, %v132, -inf
        %200 = vmax.xlane.f32.xlu0 %v199
        %v201 = vpop.xlane.xlu0 %200
        %v202 = vsel %vm198, %v132, inf
        %203 = vmin.xlane.f32.xlu0 %v202
        %v204 = vpop.xlane.xlu0 %203
        %v205 = vsub.f32 %v201, %v204
        %v206 = vmul.f32 %v205, %v141
        %v207 = vrcp.pop %v206
        %v208 = vmul.f32 1.0, %v207
        %v209 = vmul.f32 %v204, %v207
        %v210 = vround.ne.pseudo %v209
        %v211 = vsub.f32 -127.0, %v210
        %v212 = vsub.f32 -127.0, %v211
        %v213 = vsub.f32 127.0, %v211
        %vm214 = vcmask 786048
        %v215 = vsel %vm214, %v132, -inf
        %216 = vmax.xlane.f32.xlu0 %v215
        %v217 = vpop.xlane.xlu0 %216
        %v218 = vsel %vm214, %v132, inf
        %219 = vmin.xlane.f32.xlu0 %v218
        %v220 = vpop.xlane.xlu0 %219
        %v221 = vsub.f32 %v217, %v220
        %v222 = vmul.f32 %v221, %v141
        %v223 = vrcp.pop %v222
        %v224 = vmul.f32 1.0, %v223
        %v225 = vmul.f32 %v220, %v223
        %v226 = vround.ne.pseudo %v225
        %v227 = vsub.f32 -127.0, %v226
        %v228 = vsub.f32 -127.0, %v227
        %v229 = vsub.f32 127.0, %v227
        %vm230 = vcmask 917248
        %v231 = vsel %vm230, %v132, -inf
        %232 = vmax.xlane.f32.xlu0 %v231
        %v233 = vpop.xlane.xlu0 %232
        %v234 = vsel %vm230, %v132, inf
        %235 = vmin.xlane.f32.xlu0 %v234
        %v236 = vpop.xlane.xlu0 %235
        %v237 = vsub.f32 %v233, %v236
        %v238 = vmul.f32 %v237, %v141
        %v239 = vrcp.pop %v238
        %v240 = vmul.f32 1.0, %v239
        %v241 = vmul.f32 %v236, %v239
        %v242 = vround.ne.pseudo %v241
        %v243 = vsub.f32 -127.0, %v242
        %v244 = vsub.f32 -127.0, %v243
        %v245 = vsub.f32 127.0, %v243
        %vm246 = vcmask 1048448
        %v247 = vsel %vm246, %v132, -inf
        %248 = vmax.xlane.f32.xlu0 %v247
        %v249 = vpop.xlane.xlu0 %248
        %v250 = vsel %vm246, %v132, inf
        %251 = vmin.xlane.f32.xlu0 %v250
        %v252 = vpop.xlane.xlu0 %251
        %v253 = vsub.f32 %v249, %v252
        %v254 = vmul.f32 %v253, %v141
        %v255 = vrcp.pop %v254
        %v256 = vmul.f32 1.0, %v255
        %v257 = vmul.f32 %v252, %v255
        %v258 = vround.ne.pseudo %v257
        %v259 = vsub.f32 -127.0, %v258
        %v260 = vsub.f32 -127.0, %v259
        %v261 = vsub.f32 127.0, %v259
        %v262 = vsel %vm133, %v142, %v158
        %vm263 = vcmask 261120
        %v264 = vsel %vm263, %v262, %v174
        %vm265 = vcmask 392192
        %v266 = vsel %vm265, %v264, %v190
        %vm267 = vcmask 523264
        %v268 = vsel %vm267, %v266, %v206
        %vm269 = vcmask 654336
        %v270 = vsel %vm269, %v268, %v222
        %vm271 = vcmask 785408
        %v272 = vsel %vm271, %v270, %v238
        %vm273 = vcmask 916480
        %v274 = vsel %vm273, %v272, %v254
        %v275 = vsel %vm133, %v144, %v160
        %v276 = vsel %vm263, %v275, %v176
        %v277 = vsel %vm265, %v276, %v192
        %v278 = vsel %vm267, %v277, %v208
        %v279 = vsel %vm269, %v278, %v224
        %v280 = vsel %vm271, %v279, %v240
        %v281 = vsel %vm273, %v280, %v256
        %v282 = vsel %vm133, %v148, %v164
        %v283 = vsel %vm263, %v282, %v180
        %v284 = vsel %vm265, %v283, %v196
        %v285 = vsel %vm267, %v284, %v212
        %v286 = vsel %vm269, %v285, %v228
        %v287 = vsel %vm271, %v286, %v244
        %v288 = vsel %vm273, %v287, %v260
        %v289 = vsel %vm133, %v149, %v165
        %v290 = vsel %vm263, %v289, %v181
        %v291 = vsel %vm265, %v290, %v197
        %v292 = vsel %vm267, %v291, %v213
        %v293 = vsel %vm269, %v292, %v229
        %v294 = vsel %vm271, %v293, %v245
        %v295 = vsel %vm273, %v294, %v261
        %v296 = vmul.f32 %v132, %v281
        %v297 = vround.ne.pseudo %v296
        %v298 = vmax.f32 %v288, %v297
        %v299 = vmin.f32 %v295, %v298
        %v300 = vmul.f32 %v299, %v274
        %301 = vst [vmem:[%s131] sm:$0xff] %v300
        %s302 = sand.u32 %s52, 1
        %s303 = scalar_lea.sflag [#allocation4], %s302
        %s304 = sand.u32 %s52, 1
        %s305 = smul.addr %s304, 8
        %s306 = scalar_lea.vmem [#allocation5], %s305
        // Predicated region
        $region29: #{tpu_custom_call.1} parent=23 // pred_check
          %p307 = pneg %p62
        $region30: #{tpu_custom_call.1} parent=23 // pred_check_branch
          %309 = sbr.rel (%p307) target = $region32
        $region31: #{tpu_custom_call.1} parent=23 // pred_region
          %s311 = ssub.s32 128, 128
          %312 = vsyncadd %s303, %s311
          %s313 = smul.addr %s18, 128
          %s314 = scalar_lea.hbm %s1, %s313
          %s316 = sshll.u32 %s306, 4
          %s317 = int_to_ptr.vmem [resolvable:$true] %s316
          %319 = dma.vmem_to_hbm [thread:$0]  %s317, 128, %s314, %s303
        $region32: #{tpu_custom_call.1} parent=23 // pred_fallthru
          _
      $region24: #{tpu_custom_call.1} parent=5 // pred_fallthru
        _
      %p320 = scmp.le.s32.totalorder 2, %s13
      // Predicated region
      $region33: #{tpu_custom_call.1} parent=5 // pred_check
        %p321 = pneg %p320
      $region34: #{tpu_custom_call.1} parent=5 // pred_check_branch
        %323 = sbr.rel (%p321) target = $region36
      $region35: #{tpu_custom_call.1} parent=5 // pred_region
        %s324 = ssub.s32 %s13, 2
        // Predicated region
        $region37: #{tpu_custom_call.1} parent=35 // pred_check
          %p325 = pneg %p68
        $region38: #{tpu_custom_call.1} parent=35 // pred_check_branch
          %327 = sbr.rel (%p325) target = $region40
        $region39: #{tpu_custom_call.1} parent=35 // pred_region
          %s328 = sand.u32 %s53, 1
          %s329 = scalar_lea.sflag [#allocation4], %s328
          %s330 = sand.u32 %s53, 1
          %s331 = smul.addr %s330, 8
          %s332 = scalar_lea.vmem [#allocation5], %s331
          %333 = dma.done %s329, 128
        $region40: #{tpu_custom_call.1} parent=35 // pred_fallthru
          _
      $region36: #{tpu_custom_call.1} parent=5 // pred_fallthru
        _
    $region6: #{tpu_custom_call.1} parent=1 // loop_footer
      %s17 = sadd.s32 1, %s13
    $region7: #{tpu_custom_call.1} parent=1 // loop_footer_branch
      %12 = sbr.rel target = $region3
    $region8: #{tpu_custom_call.1} parent=1 // loop_exit
      _
    %334 = vsyncpa [#allocation3], 1
    %s335 = scalar_lea.sflag [#allocation3], 1
    %336 = vsyncpa %s335, 1
    %337 = vsyncpa [#allocation4], 1
    %s338 = scalar_lea.sflag [#allocation4], 1
    %339 = vsyncpa %s338, 1

</llo_original>
